<compile_context>
chip_gen: v7x
topology: tpu7x:2x2x1
jax: 0.10.0
libtpu: 0.0.40
codegen_flags: <defaults>
</compile_context>

<pallas_src>
import jax
import jax.numpy as jnp
from jax.experimental import pallas as pl
from jax.experimental.pallas import tpu as pltpu


def _round_up(x: int, m: int) -> int:
    return (x + m - 1) // m * m


def _device_vmem_bytes() -> int:
    """Generation-specific physical VMEM per TensorCore (conservative guess)."""
    try:
        kind = jax.devices()[0].device_kind.lower()
    except Exception:  # pragma: no cover - non-TPU / query failure
        kind = ""
    if "v7" in kind:
        return 64 * 1024 * 1024          # v7x: 64 MiB per TensorCore
    if "v2" in kind or "v3" in kind:
        return 16 * 1024 * 1024
    return 128 * 1024 * 1024             # v4 / v5e / v5p / v6e


def _lowrank_kernel(x_ref, at_ref, bt_ref, o_ref, t_ref):
    # x_ref : (tm, in)    at_ref : (in, rank)    bt_ref : (rank, tn)
    # t_ref : (tm, rank) f32 scratch, persists across the j (out-column) axis.
    @pl.when(pl.program_id(1) == 0)
    def _():
        # First matmul computed once per row tile, f32 accumulation on the MXU.
        t_ref[...] = jnp.dot(x_ref[...], at_ref[...],
                             preferred_element_type=jnp.float32)

    t = t_ref[...]
    # Keep the second matmul's LHS in bf16 when the weights are bf16 (MXU
    # native dtype); contraction depth is only `rank`, accumulation stays f32.
    if bt_ref.dtype == jnp.bfloat16:
        t = t.astype(jnp.bfloat16)
    o_ref[...] = jnp.dot(t, bt_ref[...],
                         preferred_element_type=jnp.float32).astype(o_ref.dtype)


def _choose_row_tile(M, in_f, tn, rank, act_bytes, w_bytes, budget, tm_max):
    """Largest row tile (multiple of 8) fitting the VMEM budget.

    Accounts for double-buffered x and out tiles, the resident weights
    (conservatively counted double-buffered), and the (tm, rank) f32 scratch.
    """
    fixed = 2 * (in_f * rank + rank * tn) * w_bytes
    per_row = 2 * (in_f + tn) * act_bytes + rank * 4
    avail = max(budget - fixed, per_row * 8)
    tm = min(tm_max, avail // per_row)
    tm = max(8, (tm // 8) * 8)
    tm = min(tm, _round_up(M, 8))
    return int(tm)


def lowrank_branch_forward(x, a_weight, b_weight, alpha=1.0, *,
                           tn_max=2048, tm_max=2048, vmem_budget_bytes=None):
    """alpha * (x @ A^T) @ B^T with x of shape (..., in_features).

    a_weight: (rank, in_features)   -- PyTorch nn.Linear(in, rank).weight
    b_weight: (out_features, rank)  -- PyTorch nn.Linear(rank, out).weight
    """
    rank, in_features = a_weight.shape
    out_features = b_weight.shape[0]
    assert b_weight.shape[1] == rank
    assert rank > 0  # TODO(synk): rank <= 0 degenerate branches not lowered here.

    lead_shape = x.shape[:-1]
    x2d = x.reshape(-1, in_features)
    M = x2d.shape[0]

    act_bytes = jnp.dtype(x.dtype).itemsize

    # --- pre-transpose weights, fold alpha (in f32), cast to activation dtype.
    # Note: casting weights to x.dtype mirrors the torch module being .to()'d
    # to the weight/activation dtype; f32 master weights under bf16 activations
    # would differ slightly.
    at = a_weight.T.astype(x.dtype)                                  # (in, rank)
    bt = (b_weight.astype(jnp.float32).T * float(alpha)).astype(x.dtype)  # (rank, out)
    w_bytes = jnp.dtype(at.dtype).itemsize

    # --- output-column tile: largest 128-multiple <= tn_max dividing
    # round_up(out, 128); fall back to tn_max if the factorization is poor.
    out128 = _round_up(out_features, 128)
    if out128 <= tn_max:
        tn = out128
    else:
        nb = out128 // 128
        best = 1
        for d in range(tn_max // 128, 0, -1):
            if nb % d == 0:
                best = d
                break
        tn = 128 * best
        if tn < tn_max // 2:      # awkward factorization: accept one ragged tile
            tn = tn_max
    grid_j = pl.cdiv(out_features, tn)

    # --- row tile from a generation-specific VMEM budget.
    device_vmem = _device_vmem_bytes()
    if vmem_budget_bytes is None:
        vmem_budget_bytes = min(int(device_vmem * 0.65), 80 * 1024 * 1024)
    tm = _choose_row_tile(M, in_features, tn, rank, act_bytes, w_bytes,
                          vmem_budget_bytes, tm_max)
    grid_i = pl.cdiv(M, tm)

    # --- derive the scoped-VMEM limit from actual usage + headroom.
    vmem_used = (2 * tm * (in_features + tn) * act_bytes           # x / out (2x buffered)
                 + 2 * (in_features * rank + rank * tn) * w_bytes  # weights (conservative 2x)
                 + tm * rank * 4)                                  # t scratch
    vmem_limit = min(max(vmem_used + 8 * 1024 * 1024, 16 * 1024 * 1024),
                     int(device_vmem * 0.95))

    cost = pl.CostEstimate(
        flops=2 * M * rank * (in_features + out_features),
        transcendentals=0,
        bytes_accessed=(act_bytes * M * (in_features + out_features)
                        + w_bytes * rank * (in_features + out_features)),
    )

    out2d = pl.pallas_call(
        _lowrank_kernel,
        out_shape=jax.ShapeDtypeStruct((M, out_features), x.dtype),
        grid_spec=pltpu.PrefetchScalarGridSpec(
            num_scalar_prefetch=0,
            grid=(grid_i, grid_j),
            in_specs=[
                # x row tile: re-used (not re-fetched) across the j axis.
                pl.BlockSpec((tm, in_features), lambda i, j: (i, 0)),
                # A^T: resident (constant block index).
                pl.BlockSpec((in_features, rank), lambda i, j: (0, 0)),
                # alpha * B^T column tile.
                pl.BlockSpec((rank, tn), lambda i, j: (0, j)),
            ],
            out_specs=pl.BlockSpec((tm, tn), lambda i, j: (i, j)),
            scratch_shapes=[pltpu.VMEM((tm, rank), jnp.float32)],
        ),
        compiler_params=pltpu.CompilerParams(
            # Rows parallel (megacore splits rows -> disjoint x reads on v7x);
            # j must be arbitrary so the t scratch carries across column tiles.
            dimension_semantics=("parallel", "arbitrary"),
            vmem_limit_bytes=int(vmem_limit),
        ),
        cost_estimate=cost,
    )(x2d, at, bt)

    return out2d.reshape(*lead_shape, out_features)


def make_lowrank_params(key, in_features, out_features, rank):
    """Mimics LowRankBranch.reset_parameters(weight=W) for rank > 0:
    SVD-factorize a synthetic full weight W (out, in) into B @ A."""
    w = jax.random.normal(key, (out_features, in_features), jnp.float32) * 0.05
    u, s, vh = jnp.linalg.svd(w, full_matrices=False)
    a_weight = vh[:rank, :]                       # (rank, in_features)
    b_weight = u[:, :rank] * s[:rank][None, :]    # (out_features, rank)
    return a_weight.astype(jnp.float32), b_weight.astype(jnp.float32)


if __name__ == "__main__":
    key = jax.random.PRNGKey(0)

    # --- case 1: small shapes matching the module spec ----------------------
    batch, seq = 2, 8
    in_features, out_features, rank = 32, 64, 8
    alpha = 0.5

    kx, kw, kx2, kw2 = jax.random.split(key, 4)
    x = jax.random.normal(kx, (batch, seq, in_features), jnp.float32)
    a_w, b_w = make_lowrank_params(kw, in_features, out_features, rank)

    out = lowrank_branch_forward(x, a_w, b_w, alpha)
    out = jax.block_until_ready(out)

    ref = alpha * jnp.einsum("bsi,ri,or->bso", x, a_w, b_w)
    assert out.shape == (batch, seq, out_features)
    assert jnp.allclose(out, ref, atol=1e-4, rtol=1e-4)

    # --- case 2: larger ragged shapes (no host-side pad / slice now) --------
    b2, s2, in2, out2, r2 = 4, 200, 384, 520, 16
    x2 = jax.random.normal(kx2, (b2, s2, in2), jnp.float32)
    a2, bw2 = make_lowrank_params(kw2, in2, out2, r2)

    out_big = lowrank_branch_forward(x2, a2, bw2, 1.25)
    out_big = jax.block_until_ready(out_big)

    ref_big = 1.25 * jnp.einsum("bsi,ri,or->bso", x2, a2, bw2)
    assert out_big.shape == (b2, s2, out2)
    assert jnp.allclose(out_big, ref_big, atol=1e-3, rtol=1e-3)

    print("KERNEL_OK")
</pallas_src>

<mosaic_0001>
module attributes {stable_mosaic.version = 11 : i64} {
  func.func @_lowrank_kernel(%arg0: i32, %arg1: i32, %arg2: memref<16x32xf32, #tpu.memory_space<vmem>>, %arg3: memref<32x8xf32, #tpu.memory_space<vmem>>, %arg4: memref<8x128xf32, #tpu.memory_space<vmem>>, %arg5: memref<16x128xf32, #tpu.memory_space<vmem>>, %arg6: memref<16x8xf32, #tpu.memory_space<vmem>>) attributes {dimension_semantics = [#tpu.dimension_semantics<parallel>, #tpu.dimension_semantics<arbitrary>], iteration_bounds = array<i64: 1, 1>, scalar_prefetch = 0 : i64, scratch_operands = 1 : i64, tpu.core_type = #tpu.core_type<tc>, window_params = [{transform_indices = @transform_0, window_bounds = array<i64: 16, 32>}, {pipeline_mode = #tpu.pipeline_mode<synchronous>, transform_indices = @transform_1, window_bounds = array<i64: 32, 8>}, {transform_indices = @transform_2, window_bounds = array<i64: 8, 128>}, {transform_indices = @transform_3, window_bounds = array<i64: 16, 128>}]} {
    %c0_i32 = arith.constant 0 : i32
    %0 = arith.cmpi eq, %arg1, %c0_i32 : i32
    %1 = arith.extui %0 : i1 to i32
    %c0_i32_0 = arith.constant 0 : i32
    %2 = arith.cmpi ne, %1, %c0_i32_0 : i32
    scf.if %2 {
      %c0_6 = arith.constant 0 : index
      %c0_7 = arith.constant 0 : index
      %7 = vector.load %arg2[%c0_6, %c0_7] : memref<16x32xf32, #tpu.memory_space<vmem>>, vector<16x32xf32>
      %c0_8 = arith.constant 0 : index
      %c0_9 = arith.constant 0 : index
      %8 = vector.load %arg3[%c0_8, %c0_9] : memref<32x8xf32, #tpu.memory_space<vmem>>, vector<32x8xf32>
      %cst_10 = arith.constant dense<0.000000e+00> : vector<16x8xf32>
      %9 = tpu.matmul %7, %8, %cst_10 {dimension_numbers = #tpu.dot_dimension_numbers<[1], [0], [0], [1], [0, 0, 1, 1], [], []>} : vector<16x32xf32>, vector<32x8xf32>, vector<16x8xf32> -> vector<16x8xf32>
      %c0_11 = arith.constant 0 : index
      %c0_12 = arith.constant 0 : index
      %10 = vector.load %arg6[%c0_11, %c0_12] : memref<16x8xf32, #tpu.memory_space<vmem>>, vector<16x8xf32>
      tpu.vector_store %arg6[%c0_11, %c0_12], %9 {strides = array<i32>} : memref<16x8xf32, #tpu.memory_space<vmem>>, vector<16x8xf32>,
    } else {
    }
    %c0 = arith.constant 0 : index
    %c0_1 = arith.constant 0 : index
    %3 = vector.load %arg6[%c0, %c0_1] : memref<16x8xf32, #tpu.memory_space<vmem>>, vector<16x8xf32>
    %c0_2 = arith.constant 0 : index
    %c0_3 = arith.constant 0 : index
    %4 = vector.load %arg4[%c0_2, %c0_3] : memref<8x128xf32, #tpu.memory_space<vmem>>, vector<8x128xf32>
    %cst = arith.constant dense<0.000000e+00> : vector<16x128xf32>
    %5 = tpu.matmul %3, %4, %cst {dimension_numbers = #tpu.dot_dimension_numbers<[1], [0], [0], [1], [0, 0, 1, 1], [], []>} : vector<16x8xf32>, vector<8x128xf32>, vector<16x128xf32> -> vector<16x128xf32>
    %c0_4 = arith.constant 0 : index
    %c0_5 = arith.constant 0 : index
    %6 = vector.load %arg5[%c0_4, %c0_5] : memref<16x128xf32, #tpu.memory_space<vmem>>, vector<16x128xf32>
    tpu.vector_store %arg5[%c0_4, %c0_5], %5 {strides = array<i32>} : memref<16x128xf32, #tpu.memory_space<vmem>>, vector<16x128xf32>,
    return
  }
  func.func @transform_0(%arg0: i32, %arg1: i32) -> (i32, i32) {
    %c0_i32 = arith.constant 0 : i32
    %c0_i32_0 = arith.constant 0 : i32
    return %arg0, %c0_i32 : i32, i32
  }
  func.func @transform_1(%arg0: i32, %arg1: i32) -> (i32, i32) {
    %c0_i32 = arith.constant 0 : i32
    %c0_i32_0 = arith.constant 0 : i32
    %c0_i32_1 = arith.constant 0 : i32
    return %c0_i32, %c0_i32_0 : i32, i32
  }
  func.func @transform_2(%arg0: i32, %arg1: i32) -> (i32, i32) {
    %c0_i32 = arith.constant 0 : i32
    %c0_i32_0 = arith.constant 0 : i32
    return %c0_i32, %arg1 : i32, i32
  }
  func.func @transform_3(%arg0: i32, %arg1: i32) -> (i32, i32) {
    %c0_i32 = arith.constant 0 : i32
    return %arg0, %arg1 : i32, i32
  }
}

</mosaic_0001>

<llo_original>
// kernel: tpu_custom_call.1
$region0: #{tpu_custom_call.1}
  #allocation0 [shape = 'u32[]', space=smem, size = 0x4, offset = 0x4, fixed_abs, tag = 'smem constant byte address 0x4 - core index']
  #allocation1 [shape = 'u32[144,128]{1,0:T(1,128)}', space=vmem, size = 0x12000, scoped, tag = 'internal scratch']
  #allocation2 [shape = 'f32[16,8]{1,0:T(8,128)}', space=vmem, size = 0x2000, scoped, tag = 'scratch operand']
  %s0 = inlined_call_operand.vmem [shape: f32[16,32], index: 0, kind: input, shape index: {}]
  %s1 = inlined_call_operand.vmem [shape: f32[32,8], index: 1, kind: input, shape index: {}]
  %s2 = inlined_call_operand.vmem [shape: f32[8,64], index: 2, kind: input, shape index: {}]
  %s3 = inlined_call_operand.hbm [shape: f32[16,64], index: 3, kind: output, shape index: {}]
  %s4 = sld [smem:[#allocation0]]
  $region26: #{tpu_custom_call.1} parent=0
    _
  %s6 = ssub.s32 1, %s4
  %s7 = scalar_select 0, %s6, %s4
  $region1: #{tpu_custom_call.1} parent=0
    #allocation3 [shape = 'u8[8192]{0}', space=vmem, size = 0x2000, scoped, tag = 'output window, operand 0, single buffered']
    #allocation4 [shape = 's32[1]{0}', space=sflag, size = 0x4, scoped, tag = 'scoped memory for tpu_custom_call.1']
    %8 = vsyncpa [#allocation4], 0
    // Predicated region
    $region2: #{tpu_custom_call.1} parent=1 // pred_check
      _
    $region3: #{tpu_custom_call.1} parent=1 // pred_check_branch
      %10 = sbr.rel (0) target = $region5
    $region4: #{tpu_custom_call.1} parent=1 // pred_region
      _
    $region5: #{tpu_custom_call.1} parent=1 // pred_fallthru
      _
    // Predicated region
    $region6: #{tpu_custom_call.1} parent=1 // pred_check
      _
    $region7: #{tpu_custom_call.1} parent=1 // pred_check_branch
      %12 = sbr.rel (0) target = $region9
    $region8: #{tpu_custom_call.1} parent=1 // pred_region
      _
    $region9: #{tpu_custom_call.1} parent=1 // pred_fallthru
      _
    // Predicated region
    $region10: #{tpu_custom_call.1} parent=1 // pred_check
      _
    $region11: #{tpu_custom_call.1} parent=1 // pred_check_branch
      %14 = sbr.rel (0) target = $region13
    $region12: #{tpu_custom_call.1} parent=1 // pred_region
      _
    $region13: #{tpu_custom_call.1} parent=1 // pred_fallthru
      _
    %p15 = scmp.eq.s32.totalorder 0, 0
    // Predicated region
    $region14: #{tpu_custom_call.1} parent=1 // pred_check
      %p16 = pneg %p15
    $region15: #{tpu_custom_call.1} parent=1 // pred_check_branch
      %18 = sbr.rel (%p16) target = $region17
    $region16: #{tpu_custom_call.1} parent=1 // pred_region
      %v19 = vld [vmem:[%s0] sm:$0xff]
      %v20 = vld [vmem:[%s0 + $0x8] sm:$0xff]
      %v21 = vld [vmem:[%s1] sm:$0xff]
      %v22 = vld [vmem:[%s1 + $0x8] sm:$0xff]
      %v23 = vld [vmem:[%s1 + $0x10] sm:$0xff]
      %v24 = vld [vmem:[%s1 + $0x18] sm:$0xff]
      %vm25 = vcmask 261120
      %v27 = vsel %vm25, %v19, 0
      %v30 = vsel %vm25, %v20, 0
      %32 = vmatprep.subr.mxu0 0.0
      %33 = vmatpush1.msra.mxu0 %v21
      %34 = vmatprep.subr.mxu0 0.0
      %35 = vmatpush1.msra.mxu0 %v22
      %36 = vmatprep.subr.mxu0 0.0
      %37 = vmatpush1.msra.mxu0 %v23
      %38 = vmatprep.subr.mxu0 0.0
      %39 = vmatpush1.msra.mxu0 %v24
      %40 = vmatprep.subr.mxu0 0.0
      %41 = vmatpush1.msra.mxu0 0.0
      %42 = vmatprep.subr.mxu0 0.0
      %43 = vmatpush1.msra.mxu0 0.0
      %44 = vmatprep.subr.mxu0 0.0
      %45 = vmatpush1.msra.mxu0 0.0
      %46 = vmatprep.subr.mxu0 0.0
      %47 = vmatpush1.msra.mxu0 0.0
      %48 = vmatprep.subr.mxu0 0.0
      %49 = vmatpush1.msra.mxu0 0.0
      %50 = vmatprep.subr.mxu0 0.0
      %51 = vmatpush1.msra.mxu0 0.0
      %52 = vmatprep.subr.mxu0 0.0
      %53 = vmatpush1.msra.mxu0 0.0
      %54 = vmatprep.subr.mxu0 0.0
      %55 = vmatpush1.msra.mxu0 0.0
      %56 = vmatprep.subr.mxu0 0.0
      %57 = vmatpush1.msra.mxu0 0.0
      %58 = vmatprep.subr.mxu0 0.0
      %59 = vmatpush1.msra.mxu0 0.0
      %60 = vmatprep.subr.mxu0 0.0
      %61 = vmatpush1.msra.mxu0 0.0
      %62 = vmatprep.subr.mxu0 0.0
      %63 = vmatpush1.msra.mxu0 0.0
      %64 = vmatprep.subr.mxu0 0.0
      %65 = vmatpush1.msra.mxu0 0.0
      %66 = vmatprep.subr.mxu0 0.0
      %67 = vmatpush1.msra.mxu0 0.0
      %68 = vmatprep.subr.mxu0 0.0
      %69 = vmatpush1.msra.mxu0 0.0
      %70 = vmatprep.subr.mxu0 0.0
      %71 = vmatpush1.msra.mxu0 0.0
      %72 = vmatprep.subr.mxu0 0.0
      %73 = vmatpush1.msra.mxu0 0.0
      %74 = vmatprep.subr.mxu0 0.0
      %75 = vmatpush1.msra.mxu0 0.0
      %76 = vmatprep.subr.mxu0 0.0
      %77 = vmatpush1.msra.mxu0 0.0
      %78 = vmatprep.subr.mxu0 0.0
      %79 = vmatpush1.msra.mxu0 0.0
      %80 = vmatprep.subr.mxu0 0.0
      %81 = vmatpush1.msra.mxu0 0.0
      %82 = vmatprep.subr.mxu0 0.0
      %83 = vmatpush1.msra.mxu0 0.0
      %84 = vmatprep.subr.mxu0 0.0
      %85 = vmatpush1.msra.mxu0 0.0
      %86 = vmatprep.subr.mxu0 0.0
      %87 = vmatpush1.msra.mxu0 0.0
      %88 = vmatprep.subr.mxu0 0.0
      %89 = vmatpush1.msra.mxu0 0.0
      %90 = vmatprep.subr.mxu0 0.0
      %91 = vmatpush1.msra.mxu0 0.0
      %92 = vmatprep.subr.mxu0 0.0
      %93 = vmatpush1.msra.mxu0 0.0
      %94 = vmatprep.subr.mxu0 0.0
      %95 = vmatpush1.msra.mxu0 0.0
      %96 = vmatprep.mubr.f32.mxu0 0.0
      %97 = vmatmul.mubr.f32.gmra.mrb[0].mxu0 %v27
      %v98 = vpop.f32.mrb[0].mxu0
      %v99 = vadd.f32 0.0, %v98
      %v100 = vpop.f32.mrb[0].mxu0
      %101 = vmatprep.mubr.f32.mxu0 0.0
      %102 = vmatmul.mubr.f32.gmra.mrb[0].mxu0 %v30
      %v103 = vpop.f32.mrb[0].mxu0
      %v104 = vadd.f32 0.0, %v103
      %v105 = vpop.f32.mrb[0].mxu0
      %106 = vdwg.mxu0
      %vm107 = vcmask 64512
      %108 = vst.msk [vmem:[#allocation2] sm:$0xff] %vm107, %v99
      %109 = vst.msk [vmem:[#allocation2 + $0x8] sm:$0xff] %vm107, %v104
    $region17: #{tpu_custom_call.1} parent=1 // pred_fallthru
      _
    %v110 = vld [vmem:[#allocation2] sm:$0xff]
    %v111 = vld [vmem:[#allocation2 + $0x8] sm:$0xff]
    %v112 = vld [vmem:[%s2] sm:$0xff]
    %vm113 = vcmask 64512
    %v115 = vsel %vm113, %v110, 0
    %v118 = vsel %vm113, %v111, 0
    %120 = vmatprep.subr.mxu0 0.0
    %121 = vmatpush1.msra.mxu0 %v112
    %122 = vmatprep.subr.mxu0 0.0
    %123 = vmatpush1.msra.mxu0 0.0
    %124 = vmatprep.subr.mxu0 0.0
    %125 = vmatpush1.msra.mxu0 0.0
    %126 = vmatprep.subr.mxu0 0.0
    %127 = vmatpush1.msra.mxu0 0.0
    %128 = vmatprep.subr.mxu0 0.0
    %129 = vmatpush1.msra.mxu0 0.0
    %130 = vmatprep.subr.mxu0 0.0
    %131 = vmatpush1.msra.mxu0 0.0
    %132 = vmatprep.subr.mxu0 0.0
    %133 = vmatpush1.msra.mxu0 0.0
    %134 = vmatprep.subr.mxu0 0.0
    %135 = vmatpush1.msra.mxu0 0.0
    %136 = vmatprep.subr.mxu0 0.0
    %137 = vmatpush1.msra.mxu0 0.0
    %138 = vmatprep.subr.mxu0 0.0
    %139 = vmatpush1.msra.mxu0 0.0
    %140 = vmatprep.subr.mxu0 0.0
    %141 = vmatpush1.msra.mxu0 0.0
    %142 = vmatprep.subr.mxu0 0.0
    %143 = vmatpush1.msra.mxu0 0.0
    %144 = vmatprep.subr.mxu0 0.0
    %145 = vmatpush1.msra.mxu0 0.0
    %146 = vmatprep.subr.mxu0 0.0
    %147 = vmatpush1.msra.mxu0 0.0
    %148 = vmatprep.subr.mxu0 0.0
    %149 = vmatpush1.msra.mxu0 0.0
    %150 = vmatprep.subr.mxu0 0.0
    %151 = vmatpush1.msra.mxu0 0.0
    %152 = vmatprep.subr.mxu0 0.0
    %153 = vmatpush1.msra.mxu0 0.0
    %154 = vmatprep.subr.mxu0 0.0
    %155 = vmatpush1.msra.mxu0 0.0
    %156 = vmatprep.subr.mxu0 0.0
    %157 = vmatpush1.msra.mxu0 0.0
    %158 = vmatprep.subr.mxu0 0.0
    %159 = vmatpush1.msra.mxu0 0.0
    %160 = vmatprep.subr.mxu0 0.0
    %161 = vmatpush1.msra.mxu0 0.0
    %162 = vmatprep.subr.mxu0 0.0
    %163 = vmatpush1.msra.mxu0 0.0
    %164 = vmatprep.subr.mxu0 0.0
    %165 = vmatpush1.msra.mxu0 0.0
    %166 = vmatprep.subr.mxu0 0.0
    %167 = vmatpush1.msra.mxu0 0.0
    %168 = vmatprep.subr.mxu0 0.0
    %169 = vmatpush1.msra.mxu0 0.0
    %170 = vmatprep.subr.mxu0 0.0
    %171 = vmatpush1.msra.mxu0 0.0
    %172 = vmatprep.subr.mxu0 0.0
    %173 = vmatpush1.msra.mxu0 0.0
    %174 = vmatprep.subr.mxu0 0.0
    %175 = vmatpush1.msra.mxu0 0.0
    %176 = vmatprep.subr.mxu0 0.0
    %177 = vmatpush1.msra.mxu0 0.0
    %178 = vmatprep.subr.mxu0 0.0
    %179 = vmatpush1.msra.mxu0 0.0
    %180 = vmatprep.subr.mxu0 0.0
    %181 = vmatpush1.msra.mxu0 0.0
    %182 = vmatprep.subr.mxu0 0.0
    %183 = vmatpush1.msra.mxu0 0.0
    %184 = vmatprep.mubr.f32.mxu0 0.0
    %185 = vmatmul.mubr.f32.gmra.mrb[0].mxu0 %v115
    %v186 = vpop.f32.mrb[0].mxu0
    %v187 = vadd.f32 0.0, %v186
    %v188 = vpop.f32.mrb[0].mxu0
    %189 = vmatprep.mubr.f32.mxu0 0.0
    %190 = vmatmul.mubr.f32.gmra.mrb[0].mxu0 %v118
    %v191 = vpop.f32.mrb[0].mxu0
    %v192 = vadd.f32 0.0, %v191
    %v193 = vpop.f32.mrb[0].mxu0
    %194 = vdwg.mxu0
    %195 = vst [vmem:[#allocation3] sm:$0xff] %v187
    %196 = vst [vmem:[#allocation3 + $0x8] sm:$0xff] %v192
    // Predicated region
    $region18: #{tpu_custom_call.1} parent=1 // pred_check
      _
    $region19: #{tpu_custom_call.1} parent=1 // pred_check_branch
      %198 = sbr.rel (0) target = $region21
    $region20: #{tpu_custom_call.1} parent=1 // pred_region
      %s200 = ssub.s32 256, 256
      %201 = vsyncadd [#allocation4], %s200
      %s202 = sshll.u32 [#allocation3], 4
      %s203 = int_to_ptr.vmem [resolvable:$true] %s202
      %208 = dma.vmem_to_hbm [thread:$0]  %s203, 256, %s3, [#allocation4], 128, 128, 8
    $region21: #{tpu_custom_call.1} parent=1 // pred_fallthru
      _
    // Predicated region
    $region22: #{tpu_custom_call.1} parent=1 // pred_check
      _
    $region23: #{tpu_custom_call.1} parent=1 // pred_check_branch
      %210 = sbr.rel (0) target = $region25
    $region24: #{tpu_custom_call.1} parent=1 // pred_region
      %211 = dma.done [#allocation4], 256
    $region25: #{tpu_custom_call.1} parent=1 // pred_fallthru
      _
    %212 = vsyncpa [#allocation4], 1

</llo_original>
